<compile_context>
chip_gen: v5e
topology: v5e:2x2
jax: 0.10.0
libtpu: 0.0.40
codegen_flags: <defaults>
</compile_context>

<pallas_src>
import functools

import jax
import jax.numpy as jnp
from jax.experimental import pallas as pl
from jax.experimental.pallas import tpu as pltpu

_LANES = 128


def _round_up(x, m):
    return (x + m - 1) // m * m


def _pick_block_b(batch, requested):
    """Batch tile: multiple of 128 (lane-dense stores), >=2 grid steps when possible."""
    bb = min(max(requested, _LANES), _round_up(batch, _LANES))
    bb = _round_up(bb, _LANES)
    if batch > _LANES:
        # Cap so the grid has at least 2 steps (v7x has 2 TensorCores).
        bb = min(bb, _round_up(pl.cdiv(batch, 2), _LANES))
    return max(bb, _LANES)


def _mlp_kernel(x_ref,
                w1_ref, b1_ref,
                w2_ref, b2_ref,
                w3_ref, b3_ref,
                w4t_ref, b4t_ref,
                o_ref, *, n_sub):
    """Fused Linear->ReLU (x3) -> Linear -> Sigmoid.

    MXU inputs are bf16, accumulation is f32, elementwise math stays f32.
    The batch tile is split into `n_sub` independent sub-tiles (static unroll)
    so the LLO scheduler can overlap MXU work of one half with VPU/EUP work of
    the other half.
    """
    block_b = x_ref.shape[0]
    sub = block_b // n_sub

    for s in range(n_sub):                      # static -> straight-line code
        lo = s * sub
        xs = x_ref[lo:lo + sub, :].astype(jnp.bfloat16)

        h = jnp.dot(xs, w1_ref[...],
                    preferred_element_type=jnp.float32) + b1_ref[...]
        h = jnp.maximum(h, 0.0)
        # Dropout(0.3): identity in eval mode.

        h = jnp.dot(h.astype(jnp.bfloat16), w2_ref[...],
                    preferred_element_type=jnp.float32) + b2_ref[...]
        h = jnp.maximum(h, 0.0)
        # Dropout(0.2): identity in eval mode.

        h = jnp.dot(h.astype(jnp.bfloat16), w3_ref[...],
                    preferred_element_type=jnp.float32) + b3_ref[...]
        h = jnp.maximum(h, 0.0)

        # Head: (C, H) x (sub, H)^T -> (C, sub); batch lands on lanes (lane-dense).
        logits = jax.lax.dot_general(
            w4t_ref[...], h.astype(jnp.bfloat16),
            dimension_numbers=(((1,), (1,)), ((), ())),
            preferred_element_type=jnp.float32) + b4t_ref[...]

        # Exact sigmoid on the tiny valid slab only (C * sub elements).
        sig = 1.0 / (1.0 + jnp.exp(-logits))
        o_ref[0, :, lo:lo + sub] = sig.astype(o_ref.dtype)


def prepare_params(params):
    """One-time weight preprocessing (bf16 casts, head transpose). Call once, reuse."""
    return {
        "w1": params["w1"].astype(jnp.bfloat16),
        "b1": params["b1"].astype(jnp.float32),
        "w2": params["w2"].astype(jnp.bfloat16),
        "b2": params["b2"].astype(jnp.float32),
        "w3": params["w3"].astype(jnp.bfloat16),
        "b3": params["b3"].astype(jnp.float32),
        # Head stored transposed: (out_classes, hidden) / (out_classes, 1).
        "w4t": params["w4"].T.astype(jnp.bfloat16),
        "b4t": params["b4"].T.astype(jnp.float32),
    }


def attack_mlp_forward(x, prepped, *, block_b=2048):
    """x: (B, input_size) float32. prepped: output of prepare_params()."""
    B, in_features = x.shape
    C = prepped["w4t"].shape[0]          # out_classes

    block_b = _pick_block_b(B, block_b)
    num_blocks = pl.cdiv(B, block_b)
    grid = (num_blocks,)
    # Two independent sub-tiles per step when the tile is big enough.
    n_sub = 2 if block_b % (2 * _LANES) == 0 else 1

    w1, b1 = prepped["w1"], prepped["b1"]
    w2, b2 = prepped["w2"], prepped["b2"]
    w3, b3 = prepped["w3"], prepped["b3"]
    w4t, b4t = prepped["w4t"], prepped["b4t"]

    def _replicated(arr):
        zeros = (0,) * arr.ndim
        # Constant index_map -> fetched once; single-buffered (no re-DMA needed).
        return pl.BlockSpec(arr.shape, lambda i, zeros=zeros: zeros,
                            pipeline_mode=pl.Buffered(1))

    in_specs = [
        pl.BlockSpec((block_b, in_features), lambda i: (i, 0)),
        _replicated(w1), _replicated(b1),
        _replicated(w2), _replicated(b2),
        _replicated(w3), _replicated(b3),
        _replicated(w4t), _replicated(b4t),
    ]
    out_spec = pl.BlockSpec((1, C, block_b), lambda i: (i, 0, 0))

    h1 = w1.shape[1]
    h2 = w2.shape[1]
    h3 = w3.shape[1]
    flops = 2 * B * (in_features * h1 + h1 * h2 + h2 * h3 + h3 * C)
    bytes_accessed = (x.size * 4
                      + (w1.size + w2.size + w3.size + w4t.size) * 2
                      + (b1.size + b2.size + b3.size + b4t.size) * 4
                      + num_blocks * block_b * C * 4)

    out = pl.pallas_call(
        functools.partial(_mlp_kernel, n_sub=n_sub),
        out_shape=jax.ShapeDtypeStruct((num_blocks, C, block_b), jnp.float32),
        grid_spec=pltpu.PrefetchScalarGridSpec(
            num_scalar_prefetch=0,
            grid=grid,
            in_specs=in_specs,
            out_specs=out_spec,
        ),
        compiler_params=pltpu.CompilerParams(
            dimension_semantics=("parallel",)),
        cost_estimate=pl.CostEstimate(
            flops=flops,
            transcendentals=B * C,
            bytes_accessed=bytes_accessed),
    )(x, w1, b1, w2, b2, w3, b3, w4t, b4t)

    # (num_blocks, C, block_b) -> (num_blocks * block_b, C), drop padded tail rows.
    out = out.transpose(0, 2, 1).reshape(num_blocks * block_b, C)
    return out[:B]


def init_params(key, input_size, hidden_size=64, out_classes=1):
    """Deterministic init mirroring the nn.Linear shapes of AttackMLP."""
    dims = [(input_size, 128), (128, hidden_size),
            (hidden_size, hidden_size), (hidden_size, out_classes)]
    params = {}
    for idx, (fan_in, fan_out) in enumerate(dims, start=1):
        key, kw, kb = jax.random.split(key, 3)
        bound = 1.0 / jnp.sqrt(fan_in)
        params[f"w{idx}"] = jax.random.uniform(
            kw, (fan_in, fan_out), jnp.float32, -bound, bound)
        params[f"b{idx}"] = jax.random.uniform(
            kb, (1, fan_out), jnp.float32, -bound, bound)
    return params


def reference_forward(x, params):
    h = jnp.maximum(x @ params["w1"] + params["b1"], 0.0)
    h = jnp.maximum(h @ params["w2"] + params["b2"], 0.0)
    h = jnp.maximum(h @ params["w3"] + params["b3"], 0.0)
    return jax.nn.sigmoid(h @ params["w4"] + params["b4"])


if __name__ == "__main__":
    input_size, hidden_size, out_classes = 32, 64, 1

    key = jax.random.PRNGKey(0)
    key, kx1, kx2 = jax.random.split(key, 3)
    params = init_params(key, input_size, hidden_size, out_classes)
    prepped = prepare_params(params)           # one-time weight prep

    # Case 1: small batch -> block_b clamps to 128, 2-step grid (both v7x TCs busy).
    x1 = jax.random.normal(kx1, (256, input_size), jnp.float32)
    out1 = jax.block_until_ready(attack_mlp_forward(x1, prepped))
    ref1 = reference_forward(x1, params)
    assert out1.shape == (256, out_classes), out1.shape
    err1 = float(jnp.max(jnp.abs(out1 - ref1)))
    assert err1 < 2e-2, f"max err {err1}"      # bf16 MXU inputs vs pure-f32 reference

    # Case 2: larger batch, block_b=512 -> 2-step grid with two sub-tiles per step.
    x2 = jax.random.normal(kx2, (1024, input_size), jnp.float32)
    out2 = jax.block_until_ready(attack_mlp_forward(x2, prepped, block_b=512))
    ref2 = reference_forward(x2, params)
    assert out2.shape == (1024, out_classes), out2.shape
    err2 = float(jnp.max(jnp.abs(out2 - ref2)))
    assert err2 < 2e-2, f"max err {err2}"

    print("KERNEL_OK")
</pallas_src>

<mosaic_0001>
module attributes {stable_mosaic.version = 11 : i64} {
  func.func @_mlp_kernel(%arg0: i32, %arg1: memref<128x32xf32, #tpu.memory_space<vmem>>, %arg2: memref<32x128xbf16, #tpu.memory_space<vmem>>, %arg3: memref<1x128xf32, #tpu.memory_space<vmem>>, %arg4: memref<128x64xbf16, #tpu.memory_space<vmem>>, %arg5: memref<1x64xf32, #tpu.memory_space<vmem>>, %arg6: memref<64x64xbf16, #tpu.memory_space<vmem>>, %arg7: memref<1x64xf32, #tpu.memory_space<vmem>>, %arg8: memref<1x64xbf16, #tpu.memory_space<vmem>>, %arg9: memref<1x1xf32, #tpu.memory_space<vmem>>, %arg10: memref<1x1x128xf32, #tpu.memory_space<vmem>>) attributes {dimension_semantics = [#tpu.dimension_semantics<parallel>], iteration_bounds = array<i64: 2>, scalar_prefetch = 0 : i64, scratch_operands = 0 : i64, tpu.core_type = #tpu.core_type<tc>, window_params = [{transform_indices = @transform_0, window_bounds = array<i64: 128, 32>}, {pipeline_mode = #tpu.pipeline_mode<synchronous>, transform_indices = @transform_1, window_bounds = array<i64: 32, 128>}, {pipeline_mode = #tpu.pipeline_mode<synchronous>, transform_indices = @transform_2, window_bounds = array<i64: 1, 128>}, {pipeline_mode = #tpu.pipeline_mode<synchronous>, transform_indices = @transform_3, window_bounds = array<i64: 128, 64>}, {pipeline_mode = #tpu.pipeline_mode<synchronous>, transform_indices = @transform_4, window_bounds = array<i64: 1, 64>}, {pipeline_mode = #tpu.pipeline_mode<synchronous>, transform_indices = @transform_5, window_bounds = array<i64: 64, 64>}, {pipeline_mode = #tpu.pipeline_mode<synchronous>, transform_indices = @transform_6, window_bounds = array<i64: 1, 64>}, {pipeline_mode = #tpu.pipeline_mode<synchronous>, transform_indices = @transform_7, window_bounds = array<i64: 1, 64>}, {pipeline_mode = #tpu.pipeline_mode<synchronous>, transform_indices = @transform_8, window_bounds = array<i64: 1, 1>}, {transform_indices = @transform_9, window_bounds = array<i64: 1, 1, 128>}]} {
    %c0 = arith.constant 0 : index
    %c0_0 = arith.constant 0 : index
    %0 = vector.load %arg1[%c0, %c0_0] : memref<128x32xf32, #tpu.memory_space<vmem>>, vector<128x32xf32>
    %1 = arith.truncf %0 : vector<128x32xf32> to vector<128x32xbf16>
    %c0_1 = arith.constant 0 : index
    %c0_2 = arith.constant 0 : index
    %2 = vector.load %arg2[%c0_1, %c0_2] : memref<32x128xbf16, #tpu.memory_space<vmem>>, vector<32x128xbf16>
    %cst = arith.constant dense<0.000000e+00> : vector<128x128xf32>
    %3 = tpu.matmul %1, %2, %cst {dimension_numbers = #tpu.dot_dimension_numbers<[1], [0], [0], [1], [0, 0, 1, 1], [], []>} : vector<128x32xbf16>, vector<32x128xbf16>, vector<128x128xf32> -> vector<128x128xf32>
    %c0_3 = arith.constant 0 : index
    %c0_4 = arith.constant 0 : index
    %4 = vector.load %arg3[%c0_3, %c0_4] : memref<1x128xf32, #tpu.memory_space<vmem>>, vector<1x128xf32>
    %5 = vector.broadcast %4 : vector<1x128xf32> to vector<128x128xf32>
    %6 = arith.addf %3, %5 : vector<128x128xf32>
    %cst_5 = arith.constant 0.000000e+00 : f32
    %7 = vector.broadcast %cst_5 : f32 to vector<128x128xf32>
    %8 = arith.maximumf %6, %7 : vector<128x128xf32>
    %9 = arith.truncf %8 : vector<128x128xf32> to vector<128x128xbf16>
    %c0_6 = arith.constant 0 : index
    %c0_7 = arith.constant 0 : index
    %10 = vector.load %arg4[%c0_6, %c0_7] : memref<128x64xbf16, #tpu.memory_space<vmem>>, vector<128x64xbf16>
    %cst_8 = arith.constant dense<0.000000e+00> : vector<128x64xf32>
    %11 = tpu.matmul %9, %10, %cst_8 {dimension_numbers = #tpu.dot_dimension_numbers<[1], [0], [0], [1], [0, 0, 1, 1], [], []>} : vector<128x128xbf16>, vector<128x64xbf16>, vector<128x64xf32> -> vector<128x64xf32>
    %c0_9 = arith.constant 0 : index
    %c0_10 = arith.constant 0 : index
    %12 = vector.load %arg5[%c0_9, %c0_10] : memref<1x64xf32, #tpu.memory_space<vmem>>, vector<1x64xf32>
    %13 = vector.broadcast %12 : vector<1x64xf32> to vector<128x64xf32>
    %14 = arith.addf %11, %13 : vector<128x64xf32>
    %cst_11 = arith.constant 0.000000e+00 : f32
    %15 = vector.broadcast %cst_11 : f32 to vector<128x64xf32>
    %16 = arith.maximumf %14, %15 : vector<128x64xf32>
    %17 = arith.truncf %16 : vector<128x64xf32> to vector<128x64xbf16>
    %c0_12 = arith.constant 0 : index
    %c0_13 = arith.constant 0 : index
    %18 = vector.load %arg6[%c0_12, %c0_13] : memref<64x64xbf16, #tpu.memory_space<vmem>>, vector<64x64xbf16>
    %cst_14 = arith.constant dense<0.000000e+00> : vector<128x64xf32>
    %19 = tpu.matmul %17, %18, %cst_14 {dimension_numbers = #tpu.dot_dimension_numbers<[1], [0], [0], [1], [0, 0, 1, 1], [], []>} : vector<128x64xbf16>, vector<64x64xbf16>, vector<128x64xf32> -> vector<128x64xf32>
    %c0_15 = arith.constant 0 : index
    %c0_16 = arith.constant 0 : index
    %20 = vector.load %arg7[%c0_15, %c0_16] : memref<1x64xf32, #tpu.memory_space<vmem>>, vector<1x64xf32>
    %21 = vector.broadcast %20 : vector<1x64xf32> to vector<128x64xf32>
    %22 = arith.addf %19, %21 : vector<128x64xf32>
    %cst_17 = arith.constant 0.000000e+00 : f32
    %23 = vector.broadcast %cst_17 : f32 to vector<128x64xf32>
    %24 = arith.maximumf %22, %23 : vector<128x64xf32>
    %c0_18 = arith.constant 0 : index
    %c0_19 = arith.constant 0 : index
    %25 = vector.load %arg8[%c0_18, %c0_19] : memref<1x64xbf16, #tpu.memory_space<vmem>>, vector<1x64xbf16>
    %26 = arith.truncf %24 : vector<128x64xf32> to vector<128x64xbf16>
    %cst_20 = arith.constant dense<0.000000e+00> : vector<1x128xf32>
    %27 = tpu.matmul %25, %26, %cst_20 {dimension_numbers = #tpu.dot_dimension_numbers<[1], [1], [0], [0], [0, 0, 1, 0], [], []>} : vector<1x64xbf16>, vector<128x64xbf16>, vector<1x128xf32> -> vector<1x128xf32>
    %c0_21 = arith.constant 0 : index
    %c0_22 = arith.constant 0 : index
    %28 = vector.load %arg9[%c0_21, %c0_22] : memref<1x1xf32, #tpu.memory_space<vmem>>, vector<1x1xf32>
    %29 = vector.broadcast %28 : vector<1x1xf32> to vector<1x128xf32>
    %30 = arith.addf %27, %29 : vector<1x128xf32>
    %cst_23 = arith.constant 0.000000e+00 : f32
    %31 = vector.broadcast %cst_23 : f32 to vector<1x128xf32>
    %32 = arith.subf %31, %30 : vector<1x128xf32>
    %33 = math.exp %32 : vector<1x128xf32>
    %cst_24 = arith.constant 1.000000e+00 : f32
    %34 = vector.broadcast %cst_24 : f32 to vector<1x128xf32>
    %35 = arith.addf %34, %33 : vector<1x128xf32>
    %cst_25 = arith.constant 1.000000e+00 : f32
    %36 = vector.broadcast %cst_25 : f32 to vector<1x128xf32>
    %37 = arith.divf %36, %35 : vector<1x128xf32>
    %c0_26 = arith.constant 0 : index
    %c0_27 = arith.constant 0 : index
    %c0_28 = arith.constant 0 : index
    %38 = vector.load %arg10[%c0_26, %c0_27, %c0_28] : memref<1x1x128xf32, #tpu.memory_space<vmem>>, vector<1x1x128xf32>
    %39 = vector.shape_cast %38 : vector<1x1x128xf32> to vector<1x128xf32>
    %40 = vector.shape_cast %37 : vector<1x128xf32> to vector<1x1x128xf32>
    tpu.vector_store %arg10[%c0_26, %c0_27, %c0_28], %40 {strides = array<i32>} : memref<1x1x128xf32, #tpu.memory_space<vmem>>, vector<1x1x128xf32>,
    return
  }
  func.func @transform_0(%arg0: i32) -> (i32, i32) {
    %c0_i32 = arith.constant 0 : i32
    %c0_i32_0 = arith.constant 0 : i32
    return %arg0, %c0_i32 : i32, i32
  }
  func.func @transform_1(%arg0: i32) -> (i32, i32) {
    %c0_i32 = arith.constant 0 : i32
    %c0_i32_0 = arith.constant 0 : i32
    %c0_i32_1 = arith.constant 0 : i32
    return %c0_i32, %c0_i32_0 : i32, i32
  }
  func.func @transform_2(%arg0: i32) -> (i32, i32) {
    %c0_i32 = arith.constant 0 : i32
    %c0_i32_0 = arith.constant 0 : i32
    %c0_i32_1 = arith.constant 0 : i32
    return %c0_i32, %c0_i32_0 : i32, i32
  }
  func.func @transform_3(%arg0: i32) -> (i32, i32) {
    %c0_i32 = arith.constant 0 : i32
    %c0_i32_0 = arith.constant 0 : i32
    %c0_i32_1 = arith.constant 0 : i32
    return %c0_i32, %c0_i32_0 : i32, i32
  }
  func.func @transform_4(%arg0: i32) -> (i32, i32) {
    %c0_i32 = arith.constant 0 : i32
    %c0_i32_0 = arith.constant 0 : i32
    %c0_i32_1 = arith.constant 0 : i32
    return %c0_i32, %c0_i32_0 : i32, i32
  }
  func.func @transform_5(%arg0: i32) -> (i32, i32) {
    %c0_i32 = arith.constant 0 : i32
    %c0_i32_0 = arith.constant 0 : i32
    %c0_i32_1 = arith.constant 0 : i32
    return %c0_i32, %c0_i32_0 : i32, i32
  }
  func.func @transform_6(%arg0: i32) -> (i32, i32) {
    %c0_i32 = arith.constant 0 : i32
    %c0_i32_0 = arith.constant 0 : i32
    %c0_i32_1 = arith.constant 0 : i32
    return %c0_i32, %c0_i32_0 : i32, i32
  }
  func.func @transform_7(%arg0: i32) -> (i32, i32) {
    %c0_i32 = arith.constant 0 : i32
    %c0_i32_0 = arith.constant 0 : i32
    %c0_i32_1 = arith.constant 0 : i32
    return %c0_i32, %c0_i32_0 : i32, i32
  }
  func.func @transform_8(%arg0: i32) -> (i32, i32) {
    %c0_i32 = arith.constant 0 : i32
    %c0_i32_0 = arith.constant 0 : i32
    %c0_i32_1 = arith.constant 0 : i32
    return %c0_i32, %c0_i32_0 : i32, i32
  }
  func.func @transform_9(%arg0: i32) -> (i32, i32, i32) {
    %c0_i32 = arith.constant 0 : i32
    %c0_i32_0 = arith.constant 0 : i32
    %c0_i32_1 = arith.constant 0 : i32
    return %arg0, %c0_i32, %c0_i32_0 : i32, i32, i32
  }
}

</mosaic_0001>

<llo_original>
// kernel: tpu_custom_call.1
$region0: #{tpu_custom_call.1}
  #allocation0 [shape = 'u32[]', space=smem, size = 0x4, offset = 0x4, fixed_abs, tag = 'smem constant byte address 0x4 - core index']
  #allocation1 [shape = 'u32[72,128]{1,0:T(1,128)}', space=vmem, size = 0x9000, scoped, tag = 'internal scratch']
  #allocation2 [shape = 'f32[1,1]{1,0:T(1,128)S(1)}', space=vmem, size = 0x200, scoped, tag = 'scoped memory for tpu_custom_call.1']
  %s0 = inlined_call_operand.vmem [shape: f32[256,32], index: 0, kind: input, shape index: {}]
  %s1 = inlined_call_operand.vmem [shape: bf16[32,128], index: 1, kind: input, shape index: {}]
  %s2 = inlined_call_operand.vmem [shape: f32[1,128], index: 2, kind: input, shape index: {}]
  %s3 = inlined_call_operand.vmem [shape: bf16[128,64], index: 3, kind: input, shape index: {}]
  %s4 = inlined_call_operand.vmem [shape: f32[1,64], index: 4, kind: input, shape index: {}]
  %s5 = inlined_call_operand.vmem [shape: bf16[64,64], index: 5, kind: input, shape index: {}]
  %s6 = inlined_call_operand.vmem [shape: f32[1,64], index: 6, kind: input, shape index: {}]
  %s7 = inlined_call_operand.vmem [shape: bf16[1,64], index: 7, kind: input, shape index: {}]
  %s8 = inlined_call_operand.<no memory space> [shape: f32[1,1], index: 8, kind: input, shape index: {}]
  %s9 = inlined_call_operand.hbm [shape: f32[2,1,128], index: 9, kind: output, shape index: {}]
  %s10 = sld [smem:[#allocation0]]
  $region69: #{tpu_custom_call.1} parent=0
    _
  %s12 = ssub.s32 1, %s10
  %s13 = scalar_select 0, %s12, %s10
  %v14 = vstv %s8
  %15 = vst [vmem:[#allocation2] sm:$0x1] %v14
  $region1: #{tpu_custom_call.1} parent=0
    #allocation3 [shape = 'u8[1024]{0}', space=vmem, size = 0x400, scoped, tag = 'output window, operand 0']
    #allocation4 [shape = 's32[2]{0}', space=sflag, size = 0x8, scoped, tag = 'scoped memory for tpu_custom_call.1']
    %16 = vsyncpa [#allocation4], 0
    %s17 = scalar_lea.sflag [#allocation4], 1
    %18 = vsyncpa %s17, 0
    loop: start=0, step=1, limit=4
    $region2: #{tpu_custom_call.1} parent=1 // loop_pre_header
      _
    $region3: #{tpu_custom_call.1} parent=1 // loop_header
      %s20 = sphi 0, %s24
      %p21 = scmp.ge.s32.totalorder %s20, 4
      %s30 = sphi 0, %s32
      %s33 = sphi 0, %s30
      %s34 = sphi 0, %s33
      %s50 = sphi 0, %s34
      %s54 = sphi 0, %s54
      %s56 = sphi 0, %s54
      %s57 = sphi 0, %s56
      %s71 = sphi 0, %s57
      %s75 = sphi 0, %s75
      %s77 = sphi 0, %s75
      %s78 = sphi 0, %s77
      %s92 = sphi 0, %s78
      %s96 = sphi 0, %s96
      %s98 = sphi 0, %s96
      %s99 = sphi 0, %s98
      %s113 = sphi 0, %s99
      %s117 = sphi 0, %s117
      %s119 = sphi 0, %s117
      %s120 = sphi 0, %s119
      %s134 = sphi 0, %s120
      %s138 = sphi 0, %s138
      %s140 = sphi 0, %s138
      %s141 = sphi 0, %s140
      %s155 = sphi 0, %s141
      %s159 = sphi 0, %s159
      %s161 = sphi 0, %s159
      %s162 = sphi 0, %s161
      %s176 = sphi 0, %s162
      %s180 = sphi 0, %s180
      %s182 = sphi 0, %s180
      %s183 = sphi 0, %s182
      %s197 = sphi 0, %s183
      %s201 = sphi 0, %s201
      %s203 = sphi 0, %s201
      %s204 = sphi 0, %s203
      %s218 = sphi 0, %s204
      %s224 = sphi 0, %s226
      %s227 = sphi 0, %s224
      %s228 = sphi 0, %s227
      %s244 = sphi 0, %s228
    $region4: #{tpu_custom_call.1} parent=1 // loop_header_branch
      %23 = sbr.rel (%p21) target = $region8
    $region5: #{tpu_custom_call.1} parent=1 // loop_body
      %s25 = ssub.s32 %s20, 1
      %s26 = ssub.s32 %s20, 2
      %s27 = sadd.s32 %s20, 1
      %s28 = ssub.s32 %s20, %s27
      %p29 = scmp.eq.s32.totalorder %s28, 0
      %s31 = sadd.s32 %s30, 1
      %s32 = scalar_select %p29, %s30, %s31
      %p35 = pneg %p29
      %p36 = scmp.eq.s32.totalorder %s20, 1
      %p37 = por %p35, %p36
      %p38 = scmp.ne.s32.totalorder %s30, %s33
      %p39 = scmp.eq.s32.totalorder %s20, 0
      %p40 = por %p38, %p39
      %p41 = scmp.ne.s32.totalorder %s30, %s33
      %p42 = scmp.eq.s32.totalorder %s25, 1
      %p43 = por %p41, %p42
      %p44 = scmp.ne.s32.totalorder %s33, %s34
      %p45 = scmp.eq.s32.totalorder %s25, 0
      %p46 = por %p44, %p45
      %p47 = scmp.ne.s32.totalorder %s33, %s34
      %p48 = scmp.eq.s32.totalorder %s26, 1
      %p49 = por %p47, %p48
      %p51 = scmp.ne.s32.totalorder %s34, %s50
      %p52 = scmp.eq.s32.totalorder %s26, 0
      %p53 = por %p51, %p52
      %s55 = sadd.s32 %s54, 1
      %p58 = scmp.eq.s32.totalorder %s20, 1
      %p59 = scmp.ne.s32.totalorder %s54, %s56
      %p60 = scmp.eq.s32.totalorder %s20, 0
      %p61 = por %p59, %p60
      %p62 = scmp.ne.s32.totalorder %s54, %s56
      %p63 = scmp.eq.s32.totalorder %s25, 1
      %p64 = por %p62, %p63
      %p65 = scmp.ne.s32.totalorder %s56, %s57
      %p66 = scmp.eq.s32.totalorder %s25, 0
      %p67 = por %p65, %p66
      %p68 = scmp.ne.s32.totalorder %s56, %s57
      %p69 = scmp.eq.s32.totalorder %s26, 1
      %p70 = por %p68, %p69
      %p72 = scmp.ne.s32.totalorder %s57, %s71
      %p73 = scmp.eq.s32.totalorder %s26, 0
      %p74 = por %p72, %p73
      %s76 = sadd.s32 %s75, 1
      %p79 = scmp.eq.s32.totalorder %s20, 1
      %p80 = scmp.ne.s32.totalorder %s75, %s77
      %p81 = scmp.eq.s32.totalorder %s20, 0
      %p82 = por %p80, %p81
      %p83 = scmp.ne.s32.totalorder %s75, %s77
      %p84 = scmp.eq.s32.totalorder %s25, 1
      %p85 = por %p83, %p84
      %p86 = scmp.ne.s32.totalorder %s77, %s78
      %p87 = scmp.eq.s32.totalorder %s25, 0
      %p88 = por %p86, %p87
      %p89 = scmp.ne.s32.totalorder %s77, %s78
      %p90 = scmp.eq.s32.totalorder %s26, 1
      %p91 = por %p89, %p90
      %p93 = scmp.ne.s32.totalorder %s78, %s92
      %p94 = scmp.eq.s32.totalorder %s26, 0
      %p95 = por %p93, %p94
      %s97 = sadd.s32 %s96, 1
      %p100 = scmp.eq.s32.totalorder %s20, 1
      %p101 = scmp.ne.s32.totalorder %s96, %s98
      %p102 = scmp.eq.s32.totalorder %s20, 0
      %p103 = por %p101, %p102
      %p104 = scmp.ne.s32.totalorder %s96, %s98
      %p105 = scmp.eq.s32.totalorder %s25, 1
      %p106 = por %p104, %p105
      %p107 = scmp.ne.s32.totalorder %s98, %s99
      %p108 = scmp.eq.s32.totalorder %s25, 0
      %p109 = por %p107, %p108
      %p110 = scmp.ne.s32.totalorder %s98, %s99
      %p111 = scmp.eq.s32.totalorder %s26, 1
      %p112 = por %p110, %p111
      %p114 = scmp.ne.s32.totalorder %s99, %s113
      %p115 = scmp.eq.s32.totalorder %s26, 0
      %p116 = por %p114, %p115
      %s118 = sadd.s32 %s117, 1
      %p121 = scmp.eq.s32.totalorder %s20, 1
      %p122 = scmp.ne.s32.totalorder %s117, %s119
      %p123 = scmp.eq.s32.totalorder %s20, 0
      %p124 = por %p122, %p123
      %p125 = scmp.ne.s32.totalorder %s117, %s119
      %p126 = scmp.eq.s32.totalorder %s25, 1
      %p127 = por %p125, %p126
      %p128 = scmp.ne.s32.totalorder %s119, %s120
      %p129 = scmp.eq.s32.totalorder %s25, 0
      %p130 = por %p128, %p129
      %p131 = scmp.ne.s32.totalorder %s119, %s120
      %p132 = scmp.eq.s32.totalorder %s26, 1
      %p133 = por %p131, %p132
      %p135 = scmp.ne.s32.totalorder %s120, %s134
      %p136 = scmp.eq.s32.totalorder %s26, 0
      %p137 = por %p135, %p136
      %s139 = sadd.s32 %s138, 1
      %p142 = scmp.eq.s32.totalorder %s20, 1
      %p143 = scmp.ne.s32.totalorder %s138, %s140
      %p144 = scmp.eq.s32.totalorder %s20, 0
      %p145 = por %p143, %p144
      %p146 = scmp.ne.s32.totalorder %s138, %s140
      %p147 = scmp.eq.s32.totalorder %s25, 1
      %p148 = por %p146, %p147
      %p149 = scmp.ne.s32.totalorder %s140, %s141
      %p150 = scmp.eq.s32.totalorder %s25, 0
      %p151 = por %p149, %p150
      %p152 = scmp.ne.s32.totalorder %s140, %s141
      %p153 = scmp.eq.s32.totalorder %s26, 1
      %p154 = por %p152, %p153
      %p156 = scmp.ne.s32.totalorder %s141, %s155
      %p157 = scmp.eq.s32.totalorder %s26, 0
      %p158 = por %p156, %p157
      %s160 = sadd.s32 %s159, 1
      %p163 = scmp.eq.s32.totalorder %s20, 1
      %p164 = scmp.ne.s32.totalorder %s159, %s161
      %p165 = scmp.eq.s32.totalorder %s20, 0
      %p166 = por %p164, %p165
      %p167 = scmp.ne.s32.totalorder %s159, %s161
      %p168 = scmp.eq.s32.totalorder %s25, 1
      %p169 = por %p167, %p168
      %p170 = scmp.ne.s32.totalorder %s161, %s162
      %p171 = scmp.eq.s32.totalorder %s25, 0
      %p172 = por %p170, %p171
      %p173 = scmp.ne.s32.totalorder %s161, %s162
      %p174 = scmp.eq.s32.totalorder %s26, 1
      %p175 = por %p173, %p174
      %p177 = scmp.ne.s32.totalorder %s162, %s176
      %p178 = scmp.eq.s32.totalorder %s26, 0
      %p179 = por %p177, %p178
      %s181 = sadd.s32 %s180, 1
      %p184 = scmp.eq.s32.totalorder %s20, 1
      %p185 = scmp.ne.s32.totalorder %s180, %s182
      %p186 = scmp.eq.s32.totalorder %s20, 0
      %p187 = por %p185, %p186
      %p188 = scmp.ne.s32.totalorder %s180, %s182
      %p189 = scmp.eq.s32.totalorder %s25, 1
      %p190 = por %p188, %p189
      %p191 = scmp.ne.s32.totalorder %s182, %s183
      %p192 = scmp.eq.s32.totalorder %s25, 0
      %p193 = por %p191, %p192
      %p194 = scmp.ne.s32.totalorder %s182, %s183
      %p195 = scmp.eq.s32.totalorder %s26, 1
      %p196 = por %p194, %p195
      %p198 = scmp.ne.s32.totalorder %s183, %s197
      %p199 = scmp.eq.s32.totalorder %s26, 0
      %p200 = por %p198, %p199
      %s202 = sadd.s32 %s201, 1
      %p205 = scmp.eq.s32.totalorder %s20, 1
      %p206 = scmp.ne.s32.totalorder %s201, %s203
      %p207 = scmp.eq.s32.totalorder %s20, 0
      %p208 = por %p206, %p207
      %p209 = scmp.ne.s32.totalorder %s201, %s203
      %p210 = scmp.eq.s32.totalorder %s25, 1
      %p211 = por %p209, %p210
      %p212 = scmp.ne.s32.totalorder %s203, %s204
      %p213 = scmp.eq.s32.totalorder %s25, 0
      %p214 = por %p212, %p213
      %p215 = scmp.ne.s32.totalorder %s203, %s204
      %p216 = scmp.eq.s32.totalorder %s26, 1
      %p217 = por %p215, %p216
      %p219 = scmp.ne.s32.totalorder %s204, %s218
      %p220 = scmp.eq.s32.totalorder %s26, 0
      %p221 = por %p219, %p220
      %s222 = ssub.s32 %s20, %s27
      %p223 = scmp.eq.s32.totalorder %s222, 0
      %s225 = sadd.s32 %s224, 1
      %s226 = scalar_select %p223, %s224, %s225
      %p229 = pneg %p223
      %p230 = scmp.eq.s32.totalorder %s20, 1
      %p231 = por %p229, %p230
      %p232 = scmp.ne.s32.totalorder %s224, %s227
      %p233 = scmp.eq.s32.totalorder %s20, 0
      %p234 = por %p232, %p233
      %p235 = scmp.ne.s32.totalorder %s224, %s227
      %p236 = scmp.eq.s32.totalorder %s25, 1
      %p237 = por %p235, %p236
      %p238 = scmp.ne.s32.totalorder %s227, %s228
      %p239 = scmp.eq.s32.totalorder %s25, 0
      %p240 = por %p238, %p239
      %p241 = scmp.ne.s32.totalorder %s227, %s228
      %p242 = scmp.eq.s32.totalorder %s26, 1
      %p243 = por %p241, %p242
      %p245 = scmp.ne.s32.totalorder %s228, %s244
      %p246 = scmp.eq.s32.totalorder %s26, 0
      %p247 = por %p245, %p246
      %p248 = scmp.le.s32.totalorder 1, %s20
      %p249 = scmp.lt.s32.totalorder %s20, 3
      %p250 = pnand %p248, %p249
      %p251 = pneg %p250
      // Predicated region
      $region9: #{tpu_custom_call.1} parent=5 // pred_check
        _
      $region10: #{tpu_custom_call.1} parent=5 // pred_check_branch
        %253 = sbr.rel (%p250) target = $region12
      $region11: #{tpu_custom_call.1} parent=5 // pred_region
        %s254 = ssub.s32 %s20, 1
        // Predicated region
        $region13: #{tpu_custom_call.1} parent=11 // pred_check
          %p255 = pneg %p67
        $region14: #{tpu_custom_call.1} parent=11 // pred_check_branch
          %257 = sbr.rel (%p255) target = $region16
        $region15: #{tpu_custom_call.1} parent=11 // pred_region
          _
        $region16: #{tpu_custom_call.1} parent=11 // pred_fallthru
          _
        // Predicated region
        $region17: #{tpu_custom_call.1} parent=11 // pred_check
          %p258 = pneg %p88
        $region18: #{tpu_custom_call.1} parent=11 // pred_check_branch
          %260 = sbr.rel (%p258) target = $region20
        $region19: #{tpu_custom_call.1} parent=11 // pred_region
          _
        $region20: #{tpu_custom_call.1} parent=11 // pred_fallthru
          _
        // Predicated region
        $region21: #{tpu_custom_call.1} parent=11 // pred_check
          %p261 = pneg %p109
        $region22: #{tpu_custom_call.1} parent=11 // pred_check_branch
          %263 = sbr.rel (%p261) target = $region24
        $region23: #{tpu_custom_call.1} parent=11 // pred_region
          _
        $region24: #{tpu_custom_call.1} parent=11 // pred_fallthru
          _
        // Predicated region
        $region25: #{tpu_custom_call.1} parent=11 // pred_check
          %p264 = pneg %p130
        $region26: #{tpu_custom_call.1} parent=11 // pred_check_branch
          %266 = sbr.rel (%p264) target = $region28
        $region27: #{tpu_custom_call.1} parent=11 // pred_region
          _
        $region28: #{tpu_custom_call.1} parent=11 // pred_fallthru
          _
        // Predicated region
        $region29: #{tpu_custom_call.1} parent=11 // pred_check
          %p267 = pneg %p151
        $region30: #{tpu_custom_call.1} parent=11 // pred_check_branch
          %269 = sbr.rel (%p267) target = $region32
        $region31: #{tpu_custom_call.1} parent=11 // pred_region
          _
        $region32: #{tpu_custom_call.1} parent=11 // pred_fallthru
          _
        // Predicated region
        $region33: #{tpu_custom_call.1} parent=11 // pred_check
          %p270 = pneg %p172
        $region34: #{tpu_custom_call.1} parent=11 // pred_check_branch
          %272 = sbr.rel (%p270) target = $region36
        $region35: #{tpu_custom_call.1} parent=11 // pred_region
          _
        $region36: #{tpu_custom_call.1} parent=11 // pred_fallthru
          _
        // Predicated region
        $region37: #{tpu_custom_call.1} parent=11 // pred_check
          %p273 = pneg %p193
        $region38: #{tpu_custom_call.1} parent=11 // pred_check_branch
          %275 = sbr.rel (%p273) target = $region40
        $region39: #{tpu_custom_call.1} parent=11 // pred_region
          _
        $region40: #{tpu_custom_call.1} parent=11 // pred_fallthru
          _
        // Predicated region
        $region41: #{tpu_custom_call.1} parent=11 // pred_check
          %p276 = pneg %p214
        $region42: #{tpu_custom_call.1} parent=11 // pred_check_branch
          %278 = sbr.rel (%p276) target = $region44
        $region43: #{tpu_custom_call.1} parent=11 // pred_region
          _
        $region44: #{tpu_custom_call.1} parent=11 // pred_fallthru
          _
      $region12: #{tpu_custom_call.1} parent=5 // pred_fallthru
        _
      %p279 = scmp.lt.s32.totalorder %s20, 2
      // Predicated region
      $region45: #{tpu_custom_call.1} parent=5 // pred_check
        %p280 = pneg %p279
      $region46: #{tpu_custom_call.1} parent=5 // pred_check_branch
        %282 = sbr.rel (%p280) target = $region48
      $region47: #{tpu_custom_call.1} parent=5 // pred_region
        // Predicated region
        $region49: #{tpu_custom_call.1} parent=47 // pred_check
          %p283 = pneg %p40
        $region50: #{tpu_custom_call.1} parent=47 // pred_check_branch
          %285 = sbr.rel (%p283) target = $region52
        $region51: #{tpu_custom_call.1} parent=47 // pred_region
          %s286 = smul.u32 16, %s20
          %p287 = scmp.lt.s32.totalorder %s286, 31
          %s288 = scalar_select %p287, %s286, 31
          %s289 = smul.addr %s288, 8
          %s290 = scalar_lea.vmem %s0, %s289
          %s291 = smul.u32 16, %s20
        $region52: #{tpu_custom_call.1} parent=47 // pred_fallthru
          _
      $region48: #{tpu_custom_call.1} parent=5 // pred_fallthru
        _
      %p292 = scmp.le.s32.totalorder 1, %s20
      %p293 = scmp.lt.s32.totalorder %s20, 3
      %p294 = pnand %p292, %p293
      %p295 = pneg %p294
      // Predicated region
      $region53: #{tpu_custom_call.1} parent=5 // pred_check
        _
      $region54: #{tpu_custom_call.1} parent=5 // pred_check_branch
        %297 = sbr.rel (%p294) target = $region56
      $region55: #{tpu_custom_call.1} parent=5 // pred_region
        %s298 = ssub.s32 %s20, 1
        %s299 = smul.u32 16, %s25
        %p300 = scmp.lt.s32.totalorder %s299, 31
        %s301 = scalar_select %p300, %s299, 31
        %s302 = smul.addr %s301, 8
        %s303 = scalar_lea.vmem %s0, %s302
        %p304 = pneg %p46
        %p305 = pneg %p43
        %p306 = pneg %p67
        %p307 = pneg %p64
        %p308 = pneg %p88
        %p309 = pneg %p85
        %p310 = pneg %p109
        %p311 = pneg %p106
        %p312 = pneg %p130
        %p313 = pneg %p127
        %p314 = pneg %p151
        %p315 = pneg %p148
        %p316 = pneg %p172
        %p317 = pneg %p169
        %p318 = pneg %p193
        %p319 = pneg %p190
        %p320 = pneg %p214
        %p321 = pneg %p211
        %p322 = pneg %p240
        %p323 = pneg %p237
        %s324 = sand.u32 %s227, 1
        %s325 = scalar_lea.sflag [#allocation4], %s324
        %s326 = sand.u32 %s227, 1
        %s327 = scalar_lea.vmem [#allocation3], %s326
        %s328 = smul.u32 16, %s25
        %p329 = scmp.lt.s32.totalorder %s328, 31
        %s330 = scalar_select %p329, %s328, 31
        %s331 = smul.addr %s330, 8
        %s332 = scalar_lea.vmem %s0, %s331
        %s333 = smul.u32 16, %s25
        %v335 = vld [vmem:[%s332] sm:$0xff]
        %v336 = vld [vmem:[%s332 + $0x8] sm:$0xff]
        %v337 = vld [vmem:[%s332 + $0x10] sm:$0xff]
        %v338 = vld [vmem:[%s332 + $0x18] sm:$0xff]
        %v339 = vld [vmem:[%s332 + $0x20] sm:$0xff]
        %v340 = vld [vmem:[%s332 + $0x28] sm:$0xff]
        %v341 = vld [vmem:[%s332 + $0x30] sm:$0xff]
        %v342 = vld [vmem:[%s332 + $0x38] sm:$0xff]
        %v343 = vld [vmem:[%s332 + $0x40] sm:$0xff]
        %v344 = vld [vmem:[%s332 + $0x48] sm:$0xff]
        %v345 = vld [vmem:[%s332 + $0x50] sm:$0xff]
        %v346 = vld [vmem:[%s332 + $0x58] sm:$0xff]
        %v347 = vld [vmem:[%s332 + $0x60] sm:$0xff]
        %v348 = vld [vmem:[%s332 + $0x68] sm:$0xff]
        %v349 = vld [vmem:[%s332 + $0x70] sm:$0xff]
        %v350 = vld [vmem:[%s332 + $0x78] sm:$0xff]
        %v351 = vpack.c.bf16 %v336, %v335
        %v352 = vpack.c.bf16 %v338, %v337
        %v353 = vpack.c.bf16 %v340, %v339
        %v354 = vpack.c.bf16 %v342, %v341
        %v355 = vpack.c.bf16 %v344, %v343
        %v356 = vpack.c.bf16 %v346, %v345
        %v357 = vpack.c.bf16 %v348, %v347
        %v358 = vpack.c.bf16 %v350, %v349
        %v359 = vld [vmem:[%s1] sm:$0xf]
        %v360 = vld [vmem:[%s1 + $0x4] sm:$0xf]
        %v361 = vld [vmem:[%s1 + $0x8] sm:$0xf]
        %v362 = vld [vmem:[%s1 + $0xc] sm:$0xf]
        %v363 = vld [vmem:[%s2] sm:$0x1]
        %v365 = vperm.slane %v363, 0
        %v371 = vunpack.c.l.b16 %v359
        %v372 = vunpack.c.l.b16 %v360
        %v373 = vunpack.c.l.b16 %v361
        %v374 = vunpack.c.l.b16 %v362
        %v375 = vpack.c.b16 %v372, %v371
        %v376 = vpack.c.b16 %v374, %v373
        %vm379 = vcmask 261120
        %v381 = vsel %vm379, %v351, 0
        %v384 = vsel %vm379, %v352, 0
        %v387 = vsel %vm379, %v353, 0
        %v390 = vsel %vm379, %v354, 0
        %v393 = vsel %vm379, %v355, 0
        %v396 = vsel %vm379, %v356, 0
        %v399 = vsel %vm379, %v357, 0
        %v402 = vsel %vm379, %v358, 0
        %404 = vmatpush.bf16.msra.mxu0 0
        %405 = vmatpush.bf16.msra.mxu0 0
        %406 = vmatpush.bf16.msra.mxu0 0
        %407 = vmatpush.bf16.msra.mxu0 0
        %408 = vmatpush.bf16.msra.mxu0 0
        %409 = vmatpush.bf16.msra.mxu0 0
        %410 = vmatpush.bf16.msra.mxu0 %v376
        %411 = vmatpush.bf16.msra.mxu0 %v375
        %412 = vmatmul.bf16.gmra.mxu0 %v381
        %v413 = vpop.f32.mrf.mxu0
        %v414 = vadd.f32 %v365, %v413
        %v415 = vpop.f32.mrf.mxu0
        %v416 = vadd.f32 %v365, %v415
        %417 = vmatmul.bf16.gmra.mxu0 %v384
        %v418 = vpop.f32.mrf.mxu0
        %v419 = vadd.f32 %v365, %v418
        %v420 = vpop.f32.mrf.mxu0
        %v421 = vadd.f32 %v365, %v420
        %422 = vmatmul.bf16.gmra.mxu0 %v387
        %v423 = vpop.f32.mrf.mxu0
        %v424 = vadd.f32 %v365, %v423
        %v425 = vpop.f32.mrf.mxu0
        %v426 = vadd.f32 %v365, %v425
        %427 = vmatmul.bf16.gmra.mxu0 %v390
        %v428 = vpop.f32.mrf.mxu0
        %v429 = vadd.f32 %v365, %v428
        %v430 = vpop.f32.mrf.mxu0
        %v431 = vadd.f32 %v365, %v430
        %432 = vmatmul.bf16.gmra.mxu0 %v393
        %v433 = vpop.f32.mrf.mxu0
        %v434 = vadd.f32 %v365, %v433
        %v435 = vpop.f32.mrf.mxu0
        %v436 = vadd.f32 %v365, %v435
        %437 = vmatmul.bf16.gmra.mxu0 %v396
        %v438 = vpop.f32.mrf.mxu0
        %v439 = vadd.f32 %v365, %v438
        %v440 = vpop.f32.mrf.mxu0
        %v441 = vadd.f32 %v365, %v440
        %442 = vmatmul.bf16.gmra.mxu0 %v399
        %v443 = vpop.f32.mrf.mxu0
        %v444 = vadd.f32 %v365, %v443
        %v445 = vpop.f32.mrf.mxu0
        %v446 = vadd.f32 %v365, %v445
        %447 = vmatmul.bf16.gmra.mxu0 %v402
        %v448 = vpop.f32.mrf.mxu0
        %v449 = vadd.f32 %v365, %v448
        %v450 = vpop.f32.mrf.mxu0
        %v451 = vadd.f32 %v365, %v450
        %452 = vdwg.mxu0
        %v453 = vmax.f32 %v414, 0.0
        %v454 = vmax.f32 %v416, 0.0
        %v455 = vmax.f32 %v419, 0.0
        %v456 = vmax.f32 %v421, 0.0
        %v457 = vmax.f32 %v424, 0.0
        %v458 = vmax.f32 %v426, 0.0
        %v459 = vmax.f32 %v429, 0.0
        %v460 = vmax.f32 %v431, 0.0
        %v461 = vmax.f32 %v434, 0.0
        %v462 = vmax.f32 %v436, 0.0
        %v463 = vmax.f32 %v439, 0.0
        %v464 = vmax.f32 %v441, 0.0
        %v465 = vmax.f32 %v444, 0.0
        %v466 = vmax.f32 %v446, 0.0
        %v467 = vmax.f32 %v449, 0.0
        %v468 = vmax.f32 %v451, 0.0
        %v469 = vpack.c.bf16 %v454, %v453
        %v470 = vpack.c.bf16 %v456, %v455
        %v471 = vpack.c.bf16 %v458, %v457
        %v472 = vpack.c.bf16 %v460, %v459
        %v473 = vpack.c.bf16 %v462, %v461
        %v474 = vpack.c.bf16 %v464, %v463
        %v475 = vpack.c.bf16 %v466, %v465
        %v476 = vpack.c.bf16 %v468, %v467
        %v477 = vld [vmem:[%s3] sm:$0xf]
        %v478 = vld [vmem:[%s3 + $0x4] sm:$0xf]
        %v479 = vld [vmem:[%s3 + $0x8] sm:$0xf]
        %v480 = vld [vmem:[%s3 + $0xc] sm:$0xf]
        %v481 = vld [vmem:[%s3 + $0x10] sm:$0xf]
        %v482 = vld [vmem:[%s3 + $0x14] sm:$0xf]
        %v483 = vld [vmem:[%s3 + $0x18] sm:$0xf]
        %v484 = vld [vmem:[%s3 + $0x1c] sm:$0xf]
        %v485 = vld [vmem:[%s3 + $0x20] sm:$0xf]
        %v486 = vld [vmem:[%s3 + $0x24] sm:$0xf]
        %v487 = vld [vmem:[%s3 + $0x28] sm:$0xf]
        %v488 = vld [vmem:[%s3 + $0x2c] sm:$0xf]
        %v489 = vld [vmem:[%s3 + $0x30] sm:$0xf]
        %v490 = vld [vmem:[%s3 + $0x34] sm:$0xf]
        %v491 = vld [vmem:[%s3 + $0x38] sm:$0xf]
        %v492 = vld [vmem:[%s3 + $0x3c] sm:$0xf]
        %v493 = vld [vmem:[%s4] sm:$0x1]
        %v495 = vperm.slane %v493, 0
        %v513 = vunpack.c.l.b16 %v477
        %v514 = vunpack.c.l.b16 %v478
        %v515 = vunpack.c.l.b16 %v479
        %v516 = vunpack.c.l.b16 %v480
        %v517 = vunpack.c.l.b16 %v481
        %v518 = vunpack.c.l.b16 %v482
        %v519 = vunpack.c.l.b16 %v483
        %v520 = vunpack.c.l.b16 %v484
        %v521 = vunpack.c.l.b16 %v485
        %v522 = vunpack.c.l.b16 %v486
        %v523 = vunpack.c.l.b16 %v487
        %v524 = vunpack.c.l.b16 %v488
        %v525 = vunpack.c.l.b16 %v489
        %v526 = vunpack.c.l.b16 %v490
        %v527 = vunpack.c.l.b16 %v491
        %v528 = vunpack.c.l.b16 %v492
        %v529 = vpack.c.b16 %v514, %v513
        %v530 = vpack.c.b16 %v516, %v515
        %v531 = vpack.c.b16 %v518, %v517
        %v532 = vpack.c.b16 %v520, %v519
        %v533 = vpack.c.b16 %v522, %v521
        %v534 = vpack.c.b16 %v524, %v523
        %v535 = vpack.c.b16 %v526, %v525
        %v536 = vpack.c.b16 %v528, %v527
        %545 = vmatpush.bf16.msra.mxu0 %v536
        %546 = vmatpush.bf16.msra.mxu0 %v535
        %547 = vmatpush.bf16.msra.mxu0 %v534
        %548 = vmatpush.bf16.msra.mxu0 %v533
        %549 = vmatpush.bf16.msra.mxu0 %v532
        %550 = vmatpush.bf16.msra.mxu0 %v531
        %551 = vmatpush.bf16.msra.mxu0 %v530
        %552 = vmatpush.bf16.msra.mxu0 %v529
        %553 = vmatmul.bf16.gmra.mxu0 %v469
        %v554 = vpop.f32.mrf.mxu0
        %v555 = vadd.f32 %v495, %v554
        %v556 = vpop.f32.mrf.mxu0
        %v557 = vadd.f32 %v495, %v556
        %558 = vmatmul.bf16.gmra.mxu0 %v470
        %v559 = vpop.f32.mrf.mxu0
        %v560 = vadd.f32 %v495, %v559
        %v561 = vpop.f32.mrf.mxu0
        %v562 = vadd.f32 %v495, %v561
        %563 = vmatmul.bf16.gmra.mxu0 %v471
        %v564 = vpop.f32.mrf.mxu0
        %v565 = vadd.f32 %v495, %v564
        %v566 = vpop.f32.mrf.mxu0
        %v567 = vadd.f32 %v495, %v566
        %568 = vmatmul.bf16.gmra.mxu0 %v472
        %v569 = vpop.f32.mrf.mxu0
        %v570 = vadd.f32 %v495, %v569
        %v571 = vpop.f32.mrf.mxu0
        %v572 = vadd.f32 %v495, %v571
        %573 = vmatmul.bf16.gmra.mxu0 %v473
        %v574 = vpop.f32.mrf.mxu0
        %v575 = vadd.f32 %v495, %v574
        %v576 = vpop.f32.mrf.mxu0
        %v577 = vadd.f32 %v495, %v576
        %578 = vmatmul.bf16.gmra.mxu0 %v474
        %v579 = vpop.f32.mrf.mxu0
        %v580 = vadd.f32 %v495, %v579
        %v581 = vpop.f32.mrf.mxu0
        %v582 = vadd.f32 %v495, %v581
        %583 = vmatmul.bf16.gmra.mxu0 %v475
        %v584 = vpop.f32.mrf.mxu0
        %v585 = vadd.f32 %v495, %v584
        %v586 = vpop.f32.mrf.mxu0
        %v587 = vadd.f32 %v495, %v586
        %588 = vmatmul.bf16.gmra.mxu0 %v476
        %v589 = vpop.f32.mrf.mxu0
        %v590 = vadd.f32 %v495, %v589
        %v591 = vpop.f32.mrf.mxu0
        %v592 = vadd.f32 %v495, %v591
        %593 = vdwg.mxu0
        %v594 = vmax.f32 %v555, 0.0
        %v595 = vmax.f32 %v557, 0.0
        %v596 = vmax.f32 %v560, 0.0
        %v597 = vmax.f32 %v562, 0.0
        %v598 = vmax.f32 %v565, 0.0
        %v599 = vmax.f32 %v567, 0.0
        %v600 = vmax.f32 %v570, 0.0
        %v601 = vmax.f32 %v572, 0.0
        %v602 = vmax.f32 %v575, 0.0
        %v603 = vmax.f32 %v577, 0.0
        %v604 = vmax.f32 %v580, 0.0
        %v605 = vmax.f32 %v582, 0.0
        %v606 = vmax.f32 %v585, 0.0
        %v607 = vmax.f32 %v587, 0.0
        %v608 = vmax.f32 %v590, 0.0
        %v609 = vmax.f32 %v592, 0.0
        %v610 = vpack.c.bf16 %v595, %v594
        %v611 = vpack.c.bf16 %v597, %v596
        %v612 = vpack.c.bf16 %v599, %v598
        %v613 = vpack.c.bf16 %v601, %v600
        %v614 = vpack.c.bf16 %v603, %v602
        %v615 = vpack.c.bf16 %v605, %v604
        %v616 = vpack.c.bf16 %v607, %v606
        %v617 = vpack.c.bf16 %v609, %v608
        %v618 = vld [vmem:[%s5] sm:$0xf]
        %v619 = vld [vmem:[%s5 + $0x4] sm:$0xf]
        %v620 = vld [vmem:[%s5 + $0x8] sm:$0xf]
        %v621 = vld [vmem:[%s5 + $0xc] sm:$0xf]
        %v622 = vld [vmem:[%s5 + $0x10] sm:$0xf]
        %v623 = vld [vmem:[%s5 + $0x14] sm:$0xf]
        %v624 = vld [vmem:[%s5 + $0x18] sm:$0xf]
        %v625 = vld [vmem:[%s5 + $0x1c] sm:$0xf]
        %v626 = vld [vmem:[%s6] sm:$0x1]
        %v628 = vperm.slane %v626, 0
        %v638 = vunpack.c.l.b16 %v618
        %v639 = vunpack.c.l.b16 %v619
        %v640 = vunpack.c.l.b16 %v620
        %v641 = vunpack.c.l.b16 %v621
        %v642 = vunpack.c.l.b16 %v622
        %v643 = vunpack.c.l.b16 %v623
        %v644 = vunpack.c.l.b16 %v624
        %v645 = vunpack.c.l.b16 %v625
        %v646 = vpack.c.b16 %v639, %v638
        %v647 = vpack.c.b16 %v641, %v640
        %v648 = vpack.c.b16 %v643, %v642
        %v649 = vpack.c.b16 %v645, %v644
        %vm654 = vcmask 523264
        %v656 = vsel %vm654, %v610, 0
        %v659 = vsel %vm654, %v611, 0
        %v662 = vsel %vm654, %v612, 0
        %v665 = vsel %vm654, %v613, 0
        %v668 = vsel %vm654, %v614, 0
        %v671 = vsel %vm654, %v615, 0
        %v674 = vsel %vm654, %v616, 0
        %v677 = vsel %vm654, %v617, 0
        %679 = vmatpush.bf16.msra.mxu0 0
        %680 = vmatpush.bf16.msra.mxu0 0
        %681 = vmatpush.bf16.msra.mxu0 0
        %682 = vmatpush.bf16.msra.mxu0 0
        %683 = vmatpush.bf16.msra.mxu0 %v649
        %684 = vmatpush.bf16.msra.mxu0 %v648
        %685 = vmatpush.bf16.msra.mxu0 %v647
        %686 = vmatpush.bf16.msra.mxu0 %v646
        %687 = vmatmul.bf16.gmra.mxu0 %v656
        %v688 = vpop.f32.mrf.mxu0
        %v689 = vadd.f32 %v628, %v688
        %v690 = vpop.f32.mrf.mxu0
        %v691 = vadd.f32 %v628, %v690
        %692 = vmatmul.bf16.gmra.mxu0 %v659
        %v693 = vpop.f32.mrf.mxu0
        %v694 = vadd.f32 %v628, %v693
        %v695 = vpop.f32.mrf.mxu0
        %v696 = vadd.f32 %v628, %v695
        %697 = vmatmul.bf16.gmra.mxu0 %v662
        %v698 = vpop.f32.mrf.mxu0
        %v699 = vadd.f32 %v628, %v698
        %v700 = vpop.f32.mrf.mxu0
        %v701 = vadd.f32 %v628, %v700
        %702 = vmatmul.bf16.gmra.mxu0 %v665
        %v703 = vpop.f32.mrf.mxu0
        %v704 = vadd.f32 %v628, %v703
        %v705 = vpop.f32.mrf.mxu0
        %v706 = vadd.f32 %v628, %v705
        %707 = vmatmul.bf16.gmra.mxu0 %v668
        %v708 = vpop.f32.mrf.mxu0
        %v709 = vadd.f32 %v628, %v708
        %v710 = vpop.f32.mrf.mxu0
        %v711 = vadd.f32 %v628, %v710
        %712 = vmatmul.bf16.gmra.mxu0 %v671
        %v713 = vpop.f32.mrf.mxu0
        %v714 = vadd.f32 %v628, %v713
        %v715 = vpop.f32.mrf.mxu0
        %v716 = vadd.f32 %v628, %v715
        %717 = vmatmul.bf16.gmra.mxu0 %v674
        %v718 = vpop.f32.mrf.mxu0
        %v719 = vadd.f32 %v628, %v718
        %v720 = vpop.f32.mrf.mxu0
        %v721 = vadd.f32 %v628, %v720
        %722 = vmatmul.bf16.gmra.mxu0 %v677
        %v723 = vpop.f32.mrf.mxu0
        %v724 = vadd.f32 %v628, %v723
        %v725 = vpop.f32.mrf.mxu0
        %v726 = vadd.f32 %v628, %v725
        %727 = vdwg.mxu0
        %v728 = vmax.f32 %v689, 0.0
        %v729 = vmax.f32 %v691, 0.0
        %v730 = vmax.f32 %v694, 0.0
        %v731 = vmax.f32 %v696, 0.0
        %v732 = vmax.f32 %v699, 0.0
        %v733 = vmax.f32 %v701, 0.0
        %v734 = vmax.f32 %v704, 0.0
        %v735 = vmax.f32 %v706, 0.0
        %v736 = vmax.f32 %v709, 0.0
        %v737 = vmax.f32 %v711, 0.0
        %v738 = vmax.f32 %v714, 0.0
        %v739 = vmax.f32 %v716, 0.0
        %v740 = vmax.f32 %v719, 0.0
        %v741 = vmax.f32 %v721, 0.0
        %v742 = vmax.f32 %v724, 0.0
        %v743 = vmax.f32 %v726, 0.0
        %v744 = vld [vmem:[%s7] sm:$0x1]
        %v745 = vpack.c.bf16 %v729, %v728
        %v746 = vpack.c.bf16 %v731, %v730
        %v747 = vpack.c.bf16 %v733, %v732
        %v748 = vpack.c.bf16 %v735, %v734
        %v749 = vpack.c.bf16 %v737, %v736
        %v750 = vpack.c.bf16 %v739, %v738
        %v751 = vpack.c.bf16 %v741, %v740
        %v752 = vpack.c.bf16 %v743, %v742
        %v753 = vld [vmem:[#allocation2] sm:$0x1]
        %755 = vset.pattern.permute.xlu0 0
        %756 = vperm.xlu0 %755, %v753
        %v757 = vpop.permute.xlu0 %756
        %v759 = vperm.slane %v757, 0
        %v761 = vsel %vm654, %v744, 0
        %v764 = vsel %vm654, %v745, 0
        %v767 = vsel %vm654, %v746, 0
        %v770 = vsel %vm654, %v747, 0
        %v773 = vsel %vm654, %v748, 0
        %v776 = vsel %vm654, %v749, 0
        %v779 = vsel %vm654, %v750, 0
        %v782 = vsel %vm654, %v751, 0
        %v785 = vsel %vm654, %v752, 0
        %787 = vmatpush.bf16.xpose.msra.mxu0 %v785
        %788 = vmatpush.bf16.xpose.msra.mxu0 %v782
        %789 = vmatpush.bf16.xpose.msra.mxu0 %v779
        %790 = vmatpush.bf16.xpose.msra.mxu0 %v776
        %791 = vmatpush.bf16.xpose.msra.mxu0 %v773
        %792 = vmatpush.bf16.xpose.msra.mxu0 %v770
        %793 = vmatpush.bf16.xpose.msra.mxu0 %v767
        %794 = vmatpush.bf16.xpose.msra.mxu0 %v764
        %795 = vmatmul.bf16.gmra.mxu0 %v761
        %v796 = vpop.f32.mrf.mxu0
        %v797 = vadd.f32 %v759, %v796
        %v798 = vpop.f32.mrf.mxu0
        %799 = vdwg.mxu0
        %v800 = vsub.f32 0.0, %v797
        %v801 = vmul.f32 %v800, 1.442695
        %v802 = vpow.pop %v801
        %v803 = vadd.f32 %v802, 1.0
        %v804 = vrcp.pop %v803
        %v805 = vmul.f32 %v803, %v804
        %v806 = vsub.f32 1.0, %v805
        %v807 = vmul.f32 %v804, %v806
        %v808 = vadd.f32 %v804, %v807
        %vm809 = vweird.f32 %v803
        %vm810 = vweird.f32 %v804
        %vm811 = vmor %vm809, %vm810
        %v812 = vsel %vm811, %v804, %v808
        %v813 = vand.u32 2147483647, %v803
        %vm814 = vcmp.eq.f32.partialorder %v813, 8.507059e+37
        %v815 = vand.u32 %v803, 2147483648
        %v816 = vor.u32 1.1754944e-38, %v815
        %v817 = vsel %vm814, %v816, %v812
        %v818 = vmul.f32 1.0, %v817
        %819 = vst [vmem:[%s327] sm:$0x1] %v818
        %s820 = sand.u32 %s227, 1
        %s821 = scalar_lea.sflag [#allocation4], %s820
        %s822 = sand.u32 %s227, 1
        %s823 = scalar_lea.vmem [#allocation3], %s822
        // Predicated region
        $region57: #{tpu_custom_call.1} parent=55 // pred_check
          %p824 = pneg %p237
        $region58: #{tpu_custom_call.1} parent=55 // pred_check_branch
          %826 = sbr.rel (%p824) target = $region60
        $region59: #{tpu_custom_call.1} parent=55 // pred_region
          %828 = vsyncadd %s821, 0
          %s829 = scalar_lea.hbm %s9, %s25
          %s831 = sshll.u32 %s823, 4
          %s832 = int_to_ptr.vmem [resolvable:$true] %s831
          %s833 = sshll.u32 %s829, 4
          %s834 = int_to_ptr.hbm [resolvable:$true] %s833
          %836 = dma.vmem_to_hbm [thread:$0]  %s832, 16, %s834, %s821
        $region60: #{tpu_custom_call.1} parent=55 // pred_fallthru
          _
      $region56: #{tpu_custom_call.1} parent=5 // pred_fallthru
        _
      %p837 = scmp.le.s32.totalorder 2, %s20
      // Predicated region
      $region61: #{tpu_custom_call.1} parent=5 // pred_check
        %p838 = pneg %p837
      $region62: #{tpu_custom_call.1} parent=5 // pred_check_branch
        %840 = sbr.rel (%p838) target = $region64
      $region63: #{tpu_custom_call.1} parent=5 // pred_region
        %s841 = ssub.s32 %s20, 2
        // Predicated region
        $region65: #{tpu_custom_call.1} parent=63 // pred_check
          %p842 = pneg %p243
        $region66: #{tpu_custom_call.1} parent=63 // pred_check_branch
          %844 = sbr.rel (%p842) target = $region68
        $region67: #{tpu_custom_call.1} parent=63 // pred_region
          %s845 = sand.u32 %s228, 1
          %s846 = scalar_lea.sflag [#allocation4], %s845
          %s847 = sand.u32 %s228, 1
          %s848 = scalar_lea.vmem [#allocation3], %s847
          %850 = dma.done %s846, 16
        $region68: #{tpu_custom_call.1} parent=63 // pred_fallthru
          _
      $region64: #{tpu_custom_call.1} parent=5 // pred_fallthru
        _
    $region6: #{tpu_custom_call.1} parent=1 // loop_footer
      %s24 = sadd.s32 1, %s20
    $region7: #{tpu_custom_call.1} parent=1 // loop_footer_branch
      %19 = sbr.rel target = $region3
    $region8: #{tpu_custom_call.1} parent=1 // loop_exit
      _
    %851 = vsyncpa [#allocation4], 1
    %s852 = scalar_lea.sflag [#allocation4], 1
    %853 = vsyncpa %s852, 1

</llo_original>
